<compile_context>
chip_gen: v7x
topology: tpu7x:2x2x1
jax: 0.10.0
libtpu: 0.0.40
codegen_flags: <defaults>
</compile_context>

<pallas_src>
import jax
import jax.numpy as jnp
from jax.experimental import pallas as pl
from jax.experimental.pallas import tpu as pltpu


def _gather_kernel(ids_ref, table_ref, out_ref, rows_vmem, sem):
    """Gather `rows_per_step` rows of the fused table into one output block.

    ids_ref   : SMEM (Sp,) int32     -- all token ids (scalar-prefetched)
    table_ref : HBM  (V, H) float32  -- fused table E @ W.T (never copied whole)
    out_ref   : VMEM (TS, H) float32 -- output rows for this grid step
    rows_vmem : VMEM (TS, H) float32 -- DMA landing buffer
    sem       : DMA semaphores, one per row in the tile
    """
    t = pl.program_id(0)
    ts, _ = out_ref.shape
    base = t * ts

    # Issue all row DMAs first, then wait: the per-row HBM latencies overlap.
    copies = []
    for r in range(ts):
        cp = pltpu.make_async_copy(
            table_ref.at[ids_ref[base + r]],   # (H,) row selected by token id
            rows_vmem.at[r],                   # (H,) destination row
            sem.at[r],
        )
        cp.start()
        copies.append(cp)
    for cp in copies:
        cp.wait()

    out_ref[...] = rows_vmem[...]


def make_biglm_forward(embedding_weight, projection_matrix, rows_per_step=8):
    """Build the forward fn.  The E @ W.T fold happens once, here (init time)."""
    # f32-exact fold so results track an f32 PyTorch reference tightly.
    fused = jnp.dot(
        embedding_weight,
        projection_matrix.T,
        preferred_element_type=jnp.float32,
        precision=jax.lax.Precision.HIGHEST,
    )  # (V, H)
    _, H = fused.shape

    @jax.jit
    def forward(indices):
        indices = indices.astype(jnp.int32)
        S = indices.shape[0]
        ts = rows_per_step
        Sp = ((S + ts - 1) // ts) * ts
        if Sp != S:
            # Pad with id 0 (a valid row); padded rows are sliced off below.
            # Never taken when S % rows_per_step == 0 (the demo path).
            indices = jnp.concatenate(
                [indices, jnp.zeros((Sp - S,), jnp.int32)], axis=0)

        out = pl.pallas_call(
            _gather_kernel,
            out_shape=jax.ShapeDtypeStruct((Sp, H), jnp.float32),
            grid_spec=pltpu.PrefetchScalarGridSpec(
                num_scalar_prefetch=1,                    # indices -> SMEM
                grid=(Sp // ts,),
                in_specs=[
                    pl.BlockSpec(memory_space=pl.ANY),    # fused table stays in HBM
                ],
                out_specs=pl.BlockSpec((ts, H), lambda t, ids: (t, 0)),
                scratch_shapes=[
                    pltpu.VMEM((ts, H), jnp.float32),     # DMA landing buffer
                    pltpu.SemaphoreType.DMA((ts,)),       # one sem per row
                ],
            ),
            compiler_params=pltpu.CompilerParams(
                dimension_semantics=("parallel",),        # v7x: 2 TCs split rows
            ),
            cost_estimate=pl.CostEstimate(
                flops=0,
                transcendentals=0,
                bytes_accessed=2 * Sp * H * 4 + Sp * 4,
            ),
        )(indices, fused)

        return out if Sp == S else out[:S]

    return forward


if __name__ == "__main__":
    # Small shapes consistent with the module: vocab=32, hidden=8, seq=16.
    num_chars = 32
    hidden_size = 8
    seq_len = 16

    key = jax.random.PRNGKey(0)
    k_emb, k_proj, k_idx = jax.random.split(key, 3)

    # nn.Embedding(num_chars, hidden_size).weight ~ N(0, 1)
    embedding_weight = jax.random.normal(
        k_emb, (num_chars, hidden_size), dtype=jnp.float32)
    # torch.rand(hidden_size, hidden_size) ~ U[0, 1)
    projection_matrix = jax.random.uniform(
        k_proj, (hidden_size, hidden_size), dtype=jnp.float32)
    # 1-D int token ids (in range; nn.Embedding would raise on OOB anyway).
    indices = jax.random.randint(
        k_idx, (seq_len,), 0, num_chars, dtype=jnp.int32)

    forward = make_biglm_forward(embedding_weight, projection_matrix)
    out = jax.block_until_ready(forward(indices))

    # Pure-JAX reference matching the PyTorch module (f32-exact matmul).
    X_ref = embedding_weight[indices]                              # (S, H)
    ref = jnp.matmul(projection_matrix, X_ref.T,
                     precision=jax.lax.Precision.HIGHEST).T        # (S, H)

    assert out.shape == (seq_len, hidden_size)
    max_err = float(jnp.max(jnp.abs(out - ref)))
    assert jnp.allclose(out, ref, atol=1e-5, rtol=1e-5), max_err

    print("KERNEL_OK")
</pallas_src>

<mosaic_0001>
module attributes {stable_mosaic.version = 11 : i64} {
  func.func @_gather_kernel(%arg0: i32, %arg1: memref<16xi32, #tpu.memory_space<smem>>, %arg2: memref<32x8xf32, #tpu.memory_space<any>>, %arg3: memref<8x8xf32, #tpu.memory_space<vmem>>, %arg4: memref<8x8xf32, #tpu.memory_space<vmem>>, %arg5: memref<8x!tpu.dma_semaphore, #tpu.memory_space<semaphore_mem>>) attributes {dimension_semantics = [#tpu.dimension_semantics<parallel>], iteration_bounds = array<i64: 2>, scalar_prefetch = 1 : i64, scratch_operands = 2 : i64, tpu.core_type = #tpu.core_type<tc>, window_params = [{}, {transform_indices = @transform_1, window_bounds = array<i64: 8, 8>}]} {
    %c8_i32 = arith.constant 8 : i32
    %0 = arith.muli %arg0, %c8_i32 : i32
    %c0_i32 = arith.constant 0 : i32
    %1 = arith.addi %0, %c0_i32 : i32
    %2 = arith.index_cast %1 : i32 to index
    %3 = memref.load %arg1[%2] : memref<16xi32, #tpu.memory_space<smem>>
    %c0_i32_0 = arith.constant 0 : i32
    %c0_i32_1 = arith.constant 0 : i32
    %c0_i32_2 = arith.constant 0 : i32
    %4 = tpu.memref_slice %arg2[%3, %c0_i32_2] : memref<32x8xf32, #tpu.memory_space<any>> -> memref<1x8xf32, #tpu.memory_space<any>>
    %5 = tpu.memref_squeeze %4 : memref<1x8xf32, #tpu.memory_space<any>> -> memref<8xf32, #tpu.memory_space<any>>
    %c0_i32_3 = arith.constant 0 : i32
    %6 = tpu.memref_slice %arg4[%c0_i32_0, %c0_i32_3] : memref<8x8xf32, #tpu.memory_space<vmem>> -> memref<1x8xf32, #tpu.memory_space<vmem>>
    %7 = tpu.memref_squeeze %6 : memref<1x8xf32, #tpu.memory_space<vmem>> -> memref<8xf32, #tpu.memory_space<vmem>>
    %8 = tpu.memref_slice %arg5[%c0_i32_1] : memref<8x!tpu.dma_semaphore, #tpu.memory_space<semaphore_mem>> -> memref<1x!tpu.dma_semaphore, #tpu.memory_space<semaphore_mem>>
    %9 = tpu.memref_squeeze %8 : memref<1x!tpu.dma_semaphore, #tpu.memory_space<semaphore_mem>> -> memref<!tpu.dma_semaphore, #tpu.memory_space<semaphore_mem>>
    tpu.enqueue_dma source(%5 : memref<8xf32, #tpu.memory_space<any>>) target(%7 : memref<8xf32, #tpu.memory_space<vmem>>) target_semaphore(%9 : memref<!tpu.dma_semaphore, #tpu.memory_space<semaphore_mem>>)
    %c1_i32 = arith.constant 1 : i32
    %10 = arith.addi %0, %c1_i32 : i32
    %11 = arith.index_cast %10 : i32 to index
    %12 = memref.load %arg1[%11] : memref<16xi32, #tpu.memory_space<smem>>
    %c1_i32_4 = arith.constant 1 : i32
    %c1_i32_5 = arith.constant 1 : i32
    %c0_i32_6 = arith.constant 0 : i32
    %13 = tpu.memref_slice %arg2[%12, %c0_i32_6] : memref<32x8xf32, #tpu.memory_space<any>> -> memref<1x8xf32, #tpu.memory_space<any>>
    %14 = tpu.memref_squeeze %13 : memref<1x8xf32, #tpu.memory_space<any>> -> memref<8xf32, #tpu.memory_space<any>>
    %c0_i32_7 = arith.constant 0 : i32
    %15 = tpu.memref_slice %arg4[%c1_i32_4, %c0_i32_7] : memref<8x8xf32, #tpu.memory_space<vmem>> -> memref<1x8xf32, #tpu.memory_space<vmem>>
    %16 = tpu.memref_squeeze %15 : memref<1x8xf32, #tpu.memory_space<vmem>> -> memref<8xf32, #tpu.memory_space<vmem>>
    %17 = tpu.memref_slice %arg5[%c1_i32_5] : memref<8x!tpu.dma_semaphore, #tpu.memory_space<semaphore_mem>> -> memref<1x!tpu.dma_semaphore, #tpu.memory_space<semaphore_mem>>
    %18 = tpu.memref_squeeze %17 : memref<1x!tpu.dma_semaphore, #tpu.memory_space<semaphore_mem>> -> memref<!tpu.dma_semaphore, #tpu.memory_space<semaphore_mem>>
    tpu.enqueue_dma source(%14 : memref<8xf32, #tpu.memory_space<any>>) target(%16 : memref<8xf32, #tpu.memory_space<vmem>>) target_semaphore(%18 : memref<!tpu.dma_semaphore, #tpu.memory_space<semaphore_mem>>)
    %c2_i32 = arith.constant 2 : i32
    %19 = arith.addi %0, %c2_i32 : i32
    %20 = arith.index_cast %19 : i32 to index
    %21 = memref.load %arg1[%20] : memref<16xi32, #tpu.memory_space<smem>>
    %c2_i32_8 = arith.constant 2 : i32
    %c2_i32_9 = arith.constant 2 : i32
    %c0_i32_10 = arith.constant 0 : i32
    %22 = tpu.memref_slice %arg2[%21, %c0_i32_10] : memref<32x8xf32, #tpu.memory_space<any>> -> memref<1x8xf32, #tpu.memory_space<any>>
    %23 = tpu.memref_squeeze %22 : memref<1x8xf32, #tpu.memory_space<any>> -> memref<8xf32, #tpu.memory_space<any>>
    %c0_i32_11 = arith.constant 0 : i32
    %24 = tpu.memref_slice %arg4[%c2_i32_8, %c0_i32_11] : memref<8x8xf32, #tpu.memory_space<vmem>> -> memref<1x8xf32, #tpu.memory_space<vmem>>
    %25 = tpu.memref_squeeze %24 : memref<1x8xf32, #tpu.memory_space<vmem>> -> memref<8xf32, #tpu.memory_space<vmem>>
    %26 = tpu.memref_slice %arg5[%c2_i32_9] : memref<8x!tpu.dma_semaphore, #tpu.memory_space<semaphore_mem>> -> memref<1x!tpu.dma_semaphore, #tpu.memory_space<semaphore_mem>>
    %27 = tpu.memref_squeeze %26 : memref<1x!tpu.dma_semaphore, #tpu.memory_space<semaphore_mem>> -> memref<!tpu.dma_semaphore, #tpu.memory_space<semaphore_mem>>
    tpu.enqueue_dma source(%23 : memref<8xf32, #tpu.memory_space<any>>) target(%25 : memref<8xf32, #tpu.memory_space<vmem>>) target_semaphore(%27 : memref<!tpu.dma_semaphore, #tpu.memory_space<semaphore_mem>>)
    %c3_i32 = arith.constant 3 : i32
    %28 = arith.addi %0, %c3_i32 : i32
    %29 = arith.index_cast %28 : i32 to index
    %30 = memref.load %arg1[%29] : memref<16xi32, #tpu.memory_space<smem>>
    %c3_i32_12 = arith.constant 3 : i32
    %c3_i32_13 = arith.constant 3 : i32
    %c0_i32_14 = arith.constant 0 : i32
    %31 = tpu.memref_slice %arg2[%30, %c0_i32_14] : memref<32x8xf32, #tpu.memory_space<any>> -> memref<1x8xf32, #tpu.memory_space<any>>
    %32 = tpu.memref_squeeze %31 : memref<1x8xf32, #tpu.memory_space<any>> -> memref<8xf32, #tpu.memory_space<any>>
    %c0_i32_15 = arith.constant 0 : i32
    %33 = tpu.memref_slice %arg4[%c3_i32_12, %c0_i32_15] : memref<8x8xf32, #tpu.memory_space<vmem>> -> memref<1x8xf32, #tpu.memory_space<vmem>>
    %34 = tpu.memref_squeeze %33 : memref<1x8xf32, #tpu.memory_space<vmem>> -> memref<8xf32, #tpu.memory_space<vmem>>
    %35 = tpu.memref_slice %arg5[%c3_i32_13] : memref<8x!tpu.dma_semaphore, #tpu.memory_space<semaphore_mem>> -> memref<1x!tpu.dma_semaphore, #tpu.memory_space<semaphore_mem>>
    %36 = tpu.memref_squeeze %35 : memref<1x!tpu.dma_semaphore, #tpu.memory_space<semaphore_mem>> -> memref<!tpu.dma_semaphore, #tpu.memory_space<semaphore_mem>>
    tpu.enqueue_dma source(%32 : memref<8xf32, #tpu.memory_space<any>>) target(%34 : memref<8xf32, #tpu.memory_space<vmem>>) target_semaphore(%36 : memref<!tpu.dma_semaphore, #tpu.memory_space<semaphore_mem>>)
    %c4_i32 = arith.constant 4 : i32
    %37 = arith.addi %0, %c4_i32 : i32
    %38 = arith.index_cast %37 : i32 to index
    %39 = memref.load %arg1[%38] : memref<16xi32, #tpu.memory_space<smem>>
    %c4_i32_16 = arith.constant 4 : i32
    %c4_i32_17 = arith.constant 4 : i32
    %c0_i32_18 = arith.constant 0 : i32
    %40 = tpu.memref_slice %arg2[%39, %c0_i32_18] : memref<32x8xf32, #tpu.memory_space<any>> -> memref<1x8xf32, #tpu.memory_space<any>>
    %41 = tpu.memref_squeeze %40 : memref<1x8xf32, #tpu.memory_space<any>> -> memref<8xf32, #tpu.memory_space<any>>
    %c0_i32_19 = arith.constant 0 : i32
    %42 = tpu.memref_slice %arg4[%c4_i32_16, %c0_i32_19] : memref<8x8xf32, #tpu.memory_space<vmem>> -> memref<1x8xf32, #tpu.memory_space<vmem>>
    %43 = tpu.memref_squeeze %42 : memref<1x8xf32, #tpu.memory_space<vmem>> -> memref<8xf32, #tpu.memory_space<vmem>>
    %44 = tpu.memref_slice %arg5[%c4_i32_17] : memref<8x!tpu.dma_semaphore, #tpu.memory_space<semaphore_mem>> -> memref<1x!tpu.dma_semaphore, #tpu.memory_space<semaphore_mem>>
    %45 = tpu.memref_squeeze %44 : memref<1x!tpu.dma_semaphore, #tpu.memory_space<semaphore_mem>> -> memref<!tpu.dma_semaphore, #tpu.memory_space<semaphore_mem>>
    tpu.enqueue_dma source(%41 : memref<8xf32, #tpu.memory_space<any>>) target(%43 : memref<8xf32, #tpu.memory_space<vmem>>) target_semaphore(%45 : memref<!tpu.dma_semaphore, #tpu.memory_space<semaphore_mem>>)
    %c5_i32 = arith.constant 5 : i32
    %46 = arith.addi %0, %c5_i32 : i32
    %47 = arith.index_cast %46 : i32 to index
    %48 = memref.load %arg1[%47] : memref<16xi32, #tpu.memory_space<smem>>
    %c5_i32_20 = arith.constant 5 : i32
    %c5_i32_21 = arith.constant 5 : i32
    %c0_i32_22 = arith.constant 0 : i32
    %49 = tpu.memref_slice %arg2[%48, %c0_i32_22] : memref<32x8xf32, #tpu.memory_space<any>> -> memref<1x8xf32, #tpu.memory_space<any>>
    %50 = tpu.memref_squeeze %49 : memref<1x8xf32, #tpu.memory_space<any>> -> memref<8xf32, #tpu.memory_space<any>>
    %c0_i32_23 = arith.constant 0 : i32
    %51 = tpu.memref_slice %arg4[%c5_i32_20, %c0_i32_23] : memref<8x8xf32, #tpu.memory_space<vmem>> -> memref<1x8xf32, #tpu.memory_space<vmem>>
    %52 = tpu.memref_squeeze %51 : memref<1x8xf32, #tpu.memory_space<vmem>> -> memref<8xf32, #tpu.memory_space<vmem>>
    %53 = tpu.memref_slice %arg5[%c5_i32_21] : memref<8x!tpu.dma_semaphore, #tpu.memory_space<semaphore_mem>> -> memref<1x!tpu.dma_semaphore, #tpu.memory_space<semaphore_mem>>
    %54 = tpu.memref_squeeze %53 : memref<1x!tpu.dma_semaphore, #tpu.memory_space<semaphore_mem>> -> memref<!tpu.dma_semaphore, #tpu.memory_space<semaphore_mem>>
    tpu.enqueue_dma source(%50 : memref<8xf32, #tpu.memory_space<any>>) target(%52 : memref<8xf32, #tpu.memory_space<vmem>>) target_semaphore(%54 : memref<!tpu.dma_semaphore, #tpu.memory_space<semaphore_mem>>)
    %c6_i32 = arith.constant 6 : i32
    %55 = arith.addi %0, %c6_i32 : i32
    %56 = arith.index_cast %55 : i32 to index
    %57 = memref.load %arg1[%56] : memref<16xi32, #tpu.memory_space<smem>>
    %c6_i32_24 = arith.constant 6 : i32
    %c6_i32_25 = arith.constant 6 : i32
    %c0_i32_26 = arith.constant 0 : i32
    %58 = tpu.memref_slice %arg2[%57, %c0_i32_26] : memref<32x8xf32, #tpu.memory_space<any>> -> memref<1x8xf32, #tpu.memory_space<any>>
    %59 = tpu.memref_squeeze %58 : memref<1x8xf32, #tpu.memory_space<any>> -> memref<8xf32, #tpu.memory_space<any>>
    %c0_i32_27 = arith.constant 0 : i32
    %60 = tpu.memref_slice %arg4[%c6_i32_24, %c0_i32_27] : memref<8x8xf32, #tpu.memory_space<vmem>> -> memref<1x8xf32, #tpu.memory_space<vmem>>
    %61 = tpu.memref_squeeze %60 : memref<1x8xf32, #tpu.memory_space<vmem>> -> memref<8xf32, #tpu.memory_space<vmem>>
    %62 = tpu.memref_slice %arg5[%c6_i32_25] : memref<8x!tpu.dma_semaphore, #tpu.memory_space<semaphore_mem>> -> memref<1x!tpu.dma_semaphore, #tpu.memory_space<semaphore_mem>>
    %63 = tpu.memref_squeeze %62 : memref<1x!tpu.dma_semaphore, #tpu.memory_space<semaphore_mem>> -> memref<!tpu.dma_semaphore, #tpu.memory_space<semaphore_mem>>
    tpu.enqueue_dma source(%59 : memref<8xf32, #tpu.memory_space<any>>) target(%61 : memref<8xf32, #tpu.memory_space<vmem>>) target_semaphore(%63 : memref<!tpu.dma_semaphore, #tpu.memory_space<semaphore_mem>>)
    %c7_i32 = arith.constant 7 : i32
    %64 = arith.addi %0, %c7_i32 : i32
    %65 = arith.index_cast %64 : i32 to index
    %66 = memref.load %arg1[%65] : memref<16xi32, #tpu.memory_space<smem>>
    %c7_i32_28 = arith.constant 7 : i32
    %c7_i32_29 = arith.constant 7 : i32
    %c0_i32_30 = arith.constant 0 : i32
    %67 = tpu.memref_slice %arg2[%66, %c0_i32_30] : memref<32x8xf32, #tpu.memory_space<any>> -> memref<1x8xf32, #tpu.memory_space<any>>
    %68 = tpu.memref_squeeze %67 : memref<1x8xf32, #tpu.memory_space<any>> -> memref<8xf32, #tpu.memory_space<any>>
    %c0_i32_31 = arith.constant 0 : i32
    %69 = tpu.memref_slice %arg4[%c7_i32_28, %c0_i32_31] : memref<8x8xf32, #tpu.memory_space<vmem>> -> memref<1x8xf32, #tpu.memory_space<vmem>>
    %70 = tpu.memref_squeeze %69 : memref<1x8xf32, #tpu.memory_space<vmem>> -> memref<8xf32, #tpu.memory_space<vmem>>
    %71 = tpu.memref_slice %arg5[%c7_i32_29] : memref<8x!tpu.dma_semaphore, #tpu.memory_space<semaphore_mem>> -> memref<1x!tpu.dma_semaphore, #tpu.memory_space<semaphore_mem>>
    %72 = tpu.memref_squeeze %71 : memref<1x!tpu.dma_semaphore, #tpu.memory_space<semaphore_mem>> -> memref<!tpu.dma_semaphore, #tpu.memory_space<semaphore_mem>>
    tpu.enqueue_dma source(%68 : memref<8xf32, #tpu.memory_space<any>>) target(%70 : memref<8xf32, #tpu.memory_space<vmem>>) target_semaphore(%72 : memref<!tpu.dma_semaphore, #tpu.memory_space<semaphore_mem>>)
    %c0_i32_32 = arith.constant 0 : i32
    %c0_i32_33 = arith.constant 0 : i32
    %c0_i32_34 = arith.constant 0 : i32
    %73 = tpu.memref_slice %arg2[%3, %c0_i32_34] : memref<32x8xf32, #tpu.memory_space<any>> -> memref<1x8xf32, #tpu.memory_space<any>>
    %74 = tpu.memref_squeeze %73 : memref<1x8xf32, #tpu.memory_space<any>> -> memref<8xf32, #tpu.memory_space<any>>
    %c0_i32_35 = arith.constant 0 : i32
    %75 = tpu.memref_slice %arg4[%c0_i32_32, %c0_i32_35] : memref<8x8xf32, #tpu.memory_space<vmem>> -> memref<1x8xf32, #tpu.memory_space<vmem>>
    %76 = tpu.memref_squeeze %75 : memref<1x8xf32, #tpu.memory_space<vmem>> -> memref<8xf32, #tpu.memory_space<vmem>>
    %77 = tpu.memref_slice %arg5[%c0_i32_33] : memref<8x!tpu.dma_semaphore, #tpu.memory_space<semaphore_mem>> -> memref<1x!tpu.dma_semaphore, #tpu.memory_space<semaphore_mem>>
    %78 = tpu.memref_squeeze %77 : memref<1x!tpu.dma_semaphore, #tpu.memory_space<semaphore_mem>> -> memref<!tpu.dma_semaphore, #tpu.memory_space<semaphore_mem>>
    tpu.wait_dma2 semaphore(%78 : memref<!tpu.dma_semaphore, #tpu.memory_space<semaphore_mem>>) src(%74 : memref<8xf32, #tpu.memory_space<any>>) dst(%76 : memref<8xf32, #tpu.memory_space<vmem>>)
    %c1_i32_36 = arith.constant 1 : i32
    %c1_i32_37 = arith.constant 1 : i32
    %c0_i32_38 = arith.constant 0 : i32
    %79 = tpu.memref_slice %arg2[%12, %c0_i32_38] : memref<32x8xf32, #tpu.memory_space<any>> -> memref<1x8xf32, #tpu.memory_space<any>>
    %80 = tpu.memref_squeeze %79 : memref<1x8xf32, #tpu.memory_space<any>> -> memref<8xf32, #tpu.memory_space<any>>
    %c0_i32_39 = arith.constant 0 : i32
    %81 = tpu.memref_slice %arg4[%c1_i32_36, %c0_i32_39] : memref<8x8xf32, #tpu.memory_space<vmem>> -> memref<1x8xf32, #tpu.memory_space<vmem>>
    %82 = tpu.memref_squeeze %81 : memref<1x8xf32, #tpu.memory_space<vmem>> -> memref<8xf32, #tpu.memory_space<vmem>>
    %83 = tpu.memref_slice %arg5[%c1_i32_37] : memref<8x!tpu.dma_semaphore, #tpu.memory_space<semaphore_mem>> -> memref<1x!tpu.dma_semaphore, #tpu.memory_space<semaphore_mem>>
    %84 = tpu.memref_squeeze %83 : memref<1x!tpu.dma_semaphore, #tpu.memory_space<semaphore_mem>> -> memref<!tpu.dma_semaphore, #tpu.memory_space<semaphore_mem>>
    tpu.wait_dma2 semaphore(%84 : memref<!tpu.dma_semaphore, #tpu.memory_space<semaphore_mem>>) src(%80 : memref<8xf32, #tpu.memory_space<any>>) dst(%82 : memref<8xf32, #tpu.memory_space<vmem>>)
    %c2_i32_40 = arith.constant 2 : i32
    %c2_i32_41 = arith.constant 2 : i32
    %c0_i32_42 = arith.constant 0 : i32
    %85 = tpu.memref_slice %arg2[%21, %c0_i32_42] : memref<32x8xf32, #tpu.memory_space<any>> -> memref<1x8xf32, #tpu.memory_space<any>>
    %86 = tpu.memref_squeeze %85 : memref<1x8xf32, #tpu.memory_space<any>> -> memref<8xf32, #tpu.memory_space<any>>
    %c0_i32_43 = arith.constant 0 : i32
    %87 = tpu.memref_slice %arg4[%c2_i32_40, %c0_i32_43] : memref<8x8xf32, #tpu.memory_space<vmem>> -> memref<1x8xf32, #tpu.memory_space<vmem>>
    %88 = tpu.memref_squeeze %87 : memref<1x8xf32, #tpu.memory_space<vmem>> -> memref<8xf32, #tpu.memory_space<vmem>>
    %89 = tpu.memref_slice %arg5[%c2_i32_41] : memref<8x!tpu.dma_semaphore, #tpu.memory_space<semaphore_mem>> -> memref<1x!tpu.dma_semaphore, #tpu.memory_space<semaphore_mem>>
    %90 = tpu.memref_squeeze %89 : memref<1x!tpu.dma_semaphore, #tpu.memory_space<semaphore_mem>> -> memref<!tpu.dma_semaphore, #tpu.memory_space<semaphore_mem>>
    tpu.wait_dma2 semaphore(%90 : memref<!tpu.dma_semaphore, #tpu.memory_space<semaphore_mem>>) src(%86 : memref<8xf32, #tpu.memory_space<any>>) dst(%88 : memref<8xf32, #tpu.memory_space<vmem>>)
    %c3_i32_44 = arith.constant 3 : i32
    %c3_i32_45 = arith.constant 3 : i32
    %c0_i32_46 = arith.constant 0 : i32
    %91 = tpu.memref_slice %arg2[%30, %c0_i32_46] : memref<32x8xf32, #tpu.memory_space<any>> -> memref<1x8xf32, #tpu.memory_space<any>>
    %92 = tpu.memref_squeeze %91 : memref<1x8xf32, #tpu.memory_space<any>> -> memref<8xf32, #tpu.memory_space<any>>
    %c0_i32_47 = arith.constant 0 : i32
    %93 = tpu.memref_slice %arg4[%c3_i32_44, %c0_i32_47] : memref<8x8xf32, #tpu.memory_space<vmem>> -> memref<1x8xf32, #tpu.memory_space<vmem>>
    %94 = tpu.memref_squeeze %93 : memref<1x8xf32, #tpu.memory_space<vmem>> -> memref<8xf32, #tpu.memory_space<vmem>>
    %95 = tpu.memref_slice %arg5[%c3_i32_45] : memref<8x!tpu.dma_semaphore, #tpu.memory_space<semaphore_mem>> -> memref<1x!tpu.dma_semaphore, #tpu.memory_space<semaphore_mem>>
    %96 = tpu.memref_squeeze %95 : memref<1x!tpu.dma_semaphore, #tpu.memory_space<semaphore_mem>> -> memref<!tpu.dma_semaphore, #tpu.memory_space<semaphore_mem>>
    tpu.wait_dma2 semaphore(%96 : memref<!tpu.dma_semaphore, #tpu.memory_space<semaphore_mem>>) src(%92 : memref<8xf32, #tpu.memory_space<any>>) dst(%94 : memref<8xf32, #tpu.memory_space<vmem>>)
    %c4_i32_48 = arith.constant 4 : i32
    %c4_i32_49 = arith.constant 4 : i32
    %c0_i32_50 = arith.constant 0 : i32
    %97 = tpu.memref_slice %arg2[%39, %c0_i32_50] : memref<32x8xf32, #tpu.memory_space<any>> -> memref<1x8xf32, #tpu.memory_space<any>>
    %98 = tpu.memref_squeeze %97 : memref<1x8xf32, #tpu.memory_space<any>> -> memref<8xf32, #tpu.memory_space<any>>
    %c0_i32_51 = arith.constant 0 : i32
    %99 = tpu.memref_slice %arg4[%c4_i32_48, %c0_i32_51] : memref<8x8xf32, #tpu.memory_space<vmem>> -> memref<1x8xf32, #tpu.memory_space<vmem>>
    %100 = tpu.memref_squeeze %99 : memref<1x8xf32, #tpu.memory_space<vmem>> -> memref<8xf32, #tpu.memory_space<vmem>>
    %101 = tpu.memref_slice %arg5[%c4_i32_49] : memref<8x!tpu.dma_semaphore, #tpu.memory_space<semaphore_mem>> -> memref<1x!tpu.dma_semaphore, #tpu.memory_space<semaphore_mem>>
    %102 = tpu.memref_squeeze %101 : memref<1x!tpu.dma_semaphore, #tpu.memory_space<semaphore_mem>> -> memref<!tpu.dma_semaphore, #tpu.memory_space<semaphore_mem>>
    tpu.wait_dma2 semaphore(%102 : memref<!tpu.dma_semaphore, #tpu.memory_space<semaphore_mem>>) src(%98 : memref<8xf32, #tpu.memory_space<any>>) dst(%100 : memref<8xf32, #tpu.memory_space<vmem>>)
    %c5_i32_52 = arith.constant 5 : i32
    %c5_i32_53 = arith.constant 5 : i32
    %c0_i32_54 = arith.constant 0 : i32
    %103 = tpu.memref_slice %arg2[%48, %c0_i32_54] : memref<32x8xf32, #tpu.memory_space<any>> -> memref<1x8xf32, #tpu.memory_space<any>>
    %104 = tpu.memref_squeeze %103 : memref<1x8xf32, #tpu.memory_space<any>> -> memref<8xf32, #tpu.memory_space<any>>
    %c0_i32_55 = arith.constant 0 : i32
    %105 = tpu.memref_slice %arg4[%c5_i32_52, %c0_i32_55] : memref<8x8xf32, #tpu.memory_space<vmem>> -> memref<1x8xf32, #tpu.memory_space<vmem>>
    %106 = tpu.memref_squeeze %105 : memref<1x8xf32, #tpu.memory_space<vmem>> -> memref<8xf32, #tpu.memory_space<vmem>>
    %107 = tpu.memref_slice %arg5[%c5_i32_53] : memref<8x!tpu.dma_semaphore, #tpu.memory_space<semaphore_mem>> -> memref<1x!tpu.dma_semaphore, #tpu.memory_space<semaphore_mem>>
    %108 = tpu.memref_squeeze %107 : memref<1x!tpu.dma_semaphore, #tpu.memory_space<semaphore_mem>> -> memref<!tpu.dma_semaphore, #tpu.memory_space<semaphore_mem>>
    tpu.wait_dma2 semaphore(%108 : memref<!tpu.dma_semaphore, #tpu.memory_space<semaphore_mem>>) src(%104 : memref<8xf32, #tpu.memory_space<any>>) dst(%106 : memref<8xf32, #tpu.memory_space<vmem>>)
    %c6_i32_56 = arith.constant 6 : i32
    %c6_i32_57 = arith.constant 6 : i32
    %c0_i32_58 = arith.constant 0 : i32
    %109 = tpu.memref_slice %arg2[%57, %c0_i32_58] : memref<32x8xf32, #tpu.memory_space<any>> -> memref<1x8xf32, #tpu.memory_space<any>>
    %110 = tpu.memref_squeeze %109 : memref<1x8xf32, #tpu.memory_space<any>> -> memref<8xf32, #tpu.memory_space<any>>
    %c0_i32_59 = arith.constant 0 : i32
    %111 = tpu.memref_slice %arg4[%c6_i32_56, %c0_i32_59] : memref<8x8xf32, #tpu.memory_space<vmem>> -> memref<1x8xf32, #tpu.memory_space<vmem>>
    %112 = tpu.memref_squeeze %111 : memref<1x8xf32, #tpu.memory_space<vmem>> -> memref<8xf32, #tpu.memory_space<vmem>>
    %113 = tpu.memref_slice %arg5[%c6_i32_57] : memref<8x!tpu.dma_semaphore, #tpu.memory_space<semaphore_mem>> -> memref<1x!tpu.dma_semaphore, #tpu.memory_space<semaphore_mem>>
    %114 = tpu.memref_squeeze %113 : memref<1x!tpu.dma_semaphore, #tpu.memory_space<semaphore_mem>> -> memref<!tpu.dma_semaphore, #tpu.memory_space<semaphore_mem>>
    tpu.wait_dma2 semaphore(%114 : memref<!tpu.dma_semaphore, #tpu.memory_space<semaphore_mem>>) src(%110 : memref<8xf32, #tpu.memory_space<any>>) dst(%112 : memref<8xf32, #tpu.memory_space<vmem>>)
    %c7_i32_60 = arith.constant 7 : i32
    %c7_i32_61 = arith.constant 7 : i32
    %c0_i32_62 = arith.constant 0 : i32
    %115 = tpu.memref_slice %arg2[%66, %c0_i32_62] : memref<32x8xf32, #tpu.memory_space<any>> -> memref<1x8xf32, #tpu.memory_space<any>>
    %116 = tpu.memref_squeeze %115 : memref<1x8xf32, #tpu.memory_space<any>> -> memref<8xf32, #tpu.memory_space<any>>
    %c0_i32_63 = arith.constant 0 : i32
    %117 = tpu.memref_slice %arg4[%c7_i32_60, %c0_i32_63] : memref<8x8xf32, #tpu.memory_space<vmem>> -> memref<1x8xf32, #tpu.memory_space<vmem>>
    %118 = tpu.memref_squeeze %117 : memref<1x8xf32, #tpu.memory_space<vmem>> -> memref<8xf32, #tpu.memory_space<vmem>>
    %119 = tpu.memref_slice %arg5[%c7_i32_61] : memref<8x!tpu.dma_semaphore, #tpu.memory_space<semaphore_mem>> -> memref<1x!tpu.dma_semaphore, #tpu.memory_space<semaphore_mem>>
    %120 = tpu.memref_squeeze %119 : memref<1x!tpu.dma_semaphore, #tpu.memory_space<semaphore_mem>> -> memref<!tpu.dma_semaphore, #tpu.memory_space<semaphore_mem>>
    tpu.wait_dma2 semaphore(%120 : memref<!tpu.dma_semaphore, #tpu.memory_space<semaphore_mem>>) src(%116 : memref<8xf32, #tpu.memory_space<any>>) dst(%118 : memref<8xf32, #tpu.memory_space<vmem>>)
    %c0 = arith.constant 0 : index
    %c0_64 = arith.constant 0 : index
    %121 = vector.load %arg4[%c0, %c0_64] : memref<8x8xf32, #tpu.memory_space<vmem>>, vector<8x8xf32>
    %c0_65 = arith.constant 0 : index
    %c0_66 = arith.constant 0 : index
    %122 = vector.load %arg3[%c0_65, %c0_66] : memref<8x8xf32, #tpu.memory_space<vmem>>, vector<8x8xf32>
    tpu.vector_store %arg3[%c0_65, %c0_66], %121 {strides = array<i32>} : memref<8x8xf32, #tpu.memory_space<vmem>>, vector<8x8xf32>,
    return
  }
  func.func @transform_1(%arg0: i32, %arg1: memref<16xi32, #tpu.memory_space<smem>>) -> (i32, i32) {
    %c0_i32 = arith.constant 0 : i32
    %c0_i32_0 = arith.constant 0 : i32
    return %arg0, %c0_i32 : i32, i32
  }
}

</mosaic_0001>

<llo_original>
// kernel: forward.1
$region0: #{forward.1}
  #allocation0 [shape = 'u32[]', space=smem, size = 0x4, offset = 0x4, fixed_abs, tag = 'smem constant byte address 0x4 - core index']
  #allocation1 [shape = 'u32[144,128]{1,0:T(1,128)}', space=vmem, size = 0x12000, scoped, tag = 'internal scratch']
  #allocation2 [shape = 'f32[8,8]{1,0:T(8,128)}', space=vmem, size = 0x1000, scoped, tag = 'scratch operand']
  #allocation3 [shape = 's32[8]{0}', space=sflag, size = 0x20, scoped, tag = 'scratch operand']
  #allocation4 [shape = 's32[1]{0}', space=sflag, size = 0x4, scoped, tag = 'scoped memory for forward.1']
  #allocation5 [shape = 'u8[512]{0}', space=smem, size = 0x200, scoped, tag = 'prefetched SMEM operand 0']
  #allocation6 [shape = 's32[]', space=sflag, size = 0x4, offset = 0, fixed_abs, tag = 'sflag constant byte address 0x0 - dummy sync flag']
  #allocation7 [shape = 's32[]', space=sflag, size = 0x4, offset = 0, fixed_abs, tag = 'sflag constant byte address 0x0 - dummy sync flag']
  #allocation8 [shape = 'u32[]', space=smem, size = 0x4, offset = 0x44, fixed_abs, tag = 'smem constant byte address 0x44 - assertion arg 0']
  #allocation9 [shape = 'u32[]', space=smem, size = 0x4, offset = 0x48, fixed_abs, tag = 'smem constant byte address 0x48 - assertion arg 1']
  #allocation10 [shape = 's32[]', space=sflag, size = 0x4, offset = 0, fixed_abs, tag = 'sflag constant byte address 0x0 - dummy sync flag']
  #allocation11 [shape = 's32[]', space=sflag, size = 0x4, offset = 0, fixed_abs, tag = 'sflag constant byte address 0x0 - dummy sync flag']
  #allocation12 [shape = 's32[]', space=sflag, size = 0x4, offset = 0, fixed_abs, tag = 'sflag constant byte address 0x0 - dummy sync flag']
  #allocation13 [shape = 's32[]', space=sflag, size = 0x4, offset = 0, fixed_abs, tag = 'sflag constant byte address 0x0 - dummy sync flag']
  #allocation14 [shape = 's32[]', space=sflag, size = 0x4, offset = 0, fixed_abs, tag = 'sflag constant byte address 0x0 - dummy sync flag']
  #allocation15 [shape = 's32[]', space=sflag, size = 0x4, offset = 0, fixed_abs, tag = 'sflag constant byte address 0x0 - dummy sync flag']
  #allocation16 [shape = 's32[]', space=sflag, size = 0x4, offset = 0, fixed_abs, tag = 'sflag constant byte address 0x0 - dummy sync flag']
  #allocation17 [shape = 's32[]', space=sflag, size = 0x4, offset = 0, fixed_abs, tag = 'sflag constant byte address 0x0 - dummy sync flag']
  #allocation18 [shape = 's32[]', space=sflag, size = 0x4, offset = 0, fixed_abs, tag = 'sflag constant byte address 0x0 - dummy sync flag']
  #allocation19 [shape = 's32[]', space=sflag, size = 0x4, offset = 0, fixed_abs, tag = 'sflag constant byte address 0x0 - dummy sync flag']
  #allocation20 [shape = 's32[]', space=sflag, size = 0x4, offset = 0, fixed_abs, tag = 'sflag constant byte address 0x0 - dummy sync flag']
  #allocation21 [shape = 's32[]', space=sflag, size = 0x4, offset = 0, fixed_abs, tag = 'sflag constant byte address 0x0 - dummy sync flag']
  #allocation22 [shape = 's32[]', space=sflag, size = 0x4, offset = 0, fixed_abs, tag = 'sflag constant byte address 0x0 - dummy sync flag']
  #allocation23 [shape = 's32[]', space=sflag, size = 0x4, offset = 0, fixed_abs, tag = 'sflag constant byte address 0x0 - dummy sync flag']
  %s0 = inlined_call_operand.hbm [shape: s32[16], index: 0, kind: input, shape index: {}]
  %s1 = inlined_call_operand.hbm [shape: f32[32,8], index: 1, kind: input, shape index: {}]
  %s2 = inlined_call_operand.vmem [shape: f32[16,8], index: 2, kind: output, shape index: {}]
  %s3 = sld [smem:[#allocation0]]
  $region57: #{forward.1} parent=0
    _
  %s5 = ssub.s32 1, %s3
  %s6 = scalar_select 0, %s5, %s3
  %8 = dma.hbm_to_smem %s0, 16, [#allocation5], [#allocation4]
  %9 = dma.done [#allocation4], 16
  %10 = sfence
  loop: start=0, step=1, limit=3
  $region2: #{forward.1} parent=0 // loop_pre_header
    _
  $region3: #{forward.1} parent=0 // loop_header
    %s12 = sphi 0, %s16
    %p13 = scmp.ge.s32.totalorder %s12, 3
    %s21 = sphi 0, %s23
    %s24 = sphi 0, %s21
    %s34 = sphi 0, %s24
  $region4: #{forward.1} parent=0 // loop_header_branch
    %15 = sbr.rel (%p13) target = $region8
  $region5: #{forward.1} parent=0 // loop_body
    %s17 = ssub.s32 %s12, 1
    %s18 = sadd.s32 %s12, 1
    %s19 = ssub.s32 %s12, %s18
    %p20 = scmp.eq.s32.totalorder %s19, 0
    %s22 = sadd.s32 %s21, 1
    %s23 = scalar_select %p20, %s21, %s22
    %p25 = pneg %p20
    %p26 = scmp.eq.s32.totalorder %s12, 1
    %p27 = por %p25, %p26
    %p28 = scmp.ne.s32.totalorder %s21, %s24
    %p29 = scmp.eq.s32.totalorder %s12, 0
    %p30 = por %p28, %p29
    %p31 = scmp.ne.s32.totalorder %s21, %s24
    %p32 = scmp.eq.s32.totalorder %s17, 1
    %p33 = por %p31, %p32
    %p35 = scmp.ne.s32.totalorder %s24, %s34
    %p36 = scmp.eq.s32.totalorder %s17, 0
    %p37 = por %p35, %p36
    %p38 = scmp.lt.s32.totalorder %s12, 2
    // Predicated region
    $region9: #{forward.1} parent=5 // pred_check
      %p39 = pneg %p38
    $region10: #{forward.1} parent=5 // pred_check_branch
      %41 = sbr.rel (%p39) target = $region12
    $region11: #{forward.1} parent=5 // pred_region
      %p42 = pneg %p30
      %p43 = pneg %p27
      %p44 = scmp.lt.s32.totalorder %s12, 1
      %s45 = scalar_select %p44, %s12, 1
      %s46 = smul.addr %s45, 8
      %s47 = scalar_lea.vmem %s2, %s46
      %p48 = scmp.lt.s32.totalorder %s12, 1
      %s49 = scalar_select %p48, %s12, 1
      %s50 = smul.addr %s49, 8
      %s51 = scalar_lea.vmem %s2, %s50
      %s52 = smul.u32 %s12, 8
      %s53 = sld [smem:[#allocation5 + %s52]]
      %s54 = smul.addr %s53, 16
      %s55 = scalar_lea.hbm %s1, %s54
      // Predicated region
      $region13: #{forward.1} parent=11 // pred_check
        _
      $region14: #{forward.1} parent=11 // pred_check_branch
        %57 = sbr.rel target = $region16
      $region15: #{forward.1} parent=11 // pred_region
        %58 = sst [smem:[#allocation8]] [#allocation7]
        %59 = sst [smem:[#allocation9]] [#allocation6]
      $region16: #{forward.1} parent=11 // pred_fallthru
        _
      %61 = shalt.err (0)
      %s63 = sshll.u32 [#allocation2], 4
      %s64 = int_to_ptr.vmem [resolvable:$true] %s63
      %66 = dma.hbm_to_vmem [thread:$0]  %s55, 16, %s64, [#allocation3]
      %s67 = sadd.s32 %s52, 1
      %s68 = sld [smem:[#allocation5 + %s67]]
      %s69 = smul.addr %s68, 16
      %s70 = scalar_lea.hbm %s1, %s69
      %s71 = scalar_lea.vmem [#allocation2], 1
      %s72 = scalar_lea.sflag [#allocation3], 1
      // Predicated region
      $region17: #{forward.1} parent=11 // pred_check
        _
      $region18: #{forward.1} parent=11 // pred_check_branch
        %74 = sbr.rel target = $region20
      $region19: #{forward.1} parent=11 // pred_region
        %75 = sst [smem:[#allocation8]] [#allocation11]
        %76 = sst [smem:[#allocation9]] [#allocation10]
      $region20: #{forward.1} parent=11 // pred_fallthru
        _
      %78 = shalt.err (0)
      %s80 = sshll.u32 %s71, 4
      %s81 = int_to_ptr.vmem [resolvable:$true] %s80
      %83 = dma.hbm_to_vmem [thread:$0]  %s70, 16, %s81, %s72
      %s84 = sadd.s32 %s52, 2
      %s85 = sld [smem:[#allocation5 + %s84]]
      %s86 = smul.addr %s85, 16
      %s87 = scalar_lea.hbm %s1, %s86
      %s88 = scalar_lea.vmem [#allocation2], 2
      %s89 = scalar_lea.sflag [#allocation3], 2
      // Predicated region
      $region21: #{forward.1} parent=11 // pred_check
        _
      $region22: #{forward.1} parent=11 // pred_check_branch
        %91 = sbr.rel target = $region24
      $region23: #{forward.1} parent=11 // pred_region
        %92 = sst [smem:[#allocation8]] [#allocation13]
        %93 = sst [smem:[#allocation9]] [#allocation12]
      $region24: #{forward.1} parent=11 // pred_fallthru
        _
      %95 = shalt.err (0)
      %s97 = sshll.u32 %s88, 4
      %s98 = int_to_ptr.vmem [resolvable:$true] %s97
      %100 = dma.hbm_to_vmem [thread:$0]  %s87, 16, %s98, %s89
      %s101 = sadd.s32 %s52, 3
      %s102 = sld [smem:[#allocation5 + %s101]]
      %s103 = smul.addr %s102, 16
      %s104 = scalar_lea.hbm %s1, %s103
      %s105 = scalar_lea.vmem [#allocation2], 3
      %s106 = scalar_lea.sflag [#allocation3], 3
      // Predicated region
      $region25: #{forward.1} parent=11 // pred_check
        _
      $region26: #{forward.1} parent=11 // pred_check_branch
        %108 = sbr.rel target = $region28
      $region27: #{forward.1} parent=11 // pred_region
        %109 = sst [smem:[#allocation8]] [#allocation15]
        %110 = sst [smem:[#allocation9]] [#allocation14]
      $region28: #{forward.1} parent=11 // pred_fallthru
        _
      %112 = shalt.err (0)
      %s114 = sshll.u32 %s105, 4
      %s115 = int_to_ptr.vmem [resolvable:$true] %s114
      %117 = dma.hbm_to_vmem [thread:$0]  %s104, 16, %s115, %s106
      %s118 = sadd.s32 %s52, 4
      %s119 = sld [smem:[#allocation5 + %s118]]
      %s120 = smul.addr %s119, 16
      %s121 = scalar_lea.hbm %s1, %s120
      %s122 = scalar_lea.vmem [#allocation2], 4
      %s123 = scalar_lea.sflag [#allocation3], 4
      // Predicated region
      $region29: #{forward.1} parent=11 // pred_check
        _
      $region30: #{forward.1} parent=11 // pred_check_branch
        %125 = sbr.rel target = $region32
      $region31: #{forward.1} parent=11 // pred_region
        %126 = sst [smem:[#allocation8]] [#allocation17]
        %127 = sst [smem:[#allocation9]] [#allocation16]
      $region32: #{forward.1} parent=11 // pred_fallthru
        _
      %129 = shalt.err (0)
      %s131 = sshll.u32 %s122, 4
      %s132 = int_to_ptr.vmem [resolvable:$true] %s131
      %134 = dma.hbm_to_vmem [thread:$0]  %s121, 16, %s132, %s123
      %s135 = sadd.s32 %s52, 5
      %s136 = sld [smem:[#allocation5 + %s135]]
      %s137 = smul.addr %s136, 16
      %s138 = scalar_lea.hbm %s1, %s137
      %s139 = scalar_lea.vmem [#allocation2], 5
      %s140 = scalar_lea.sflag [#allocation3], 5
      // Predicated region
      $region33: #{forward.1} parent=11 // pred_check
        _
      $region34: #{forward.1} parent=11 // pred_check_branch
        %142 = sbr.rel target = $region36
      $region35: #{forward.1} parent=11 // pred_region
        %143 = sst [smem:[#allocation8]] [#allocation19]
        %144 = sst [smem:[#allocation9]] [#allocation18]
      $region36: #{forward.1} parent=11 // pred_fallthru
        _
      %146 = shalt.err (0)
      %s148 = sshll.u32 %s139, 4
      %s149 = int_to_ptr.vmem [resolvable:$true] %s148
      %151 = dma.hbm_to_vmem [thread:$0]  %s138, 16, %s149, %s140
      %s152 = sadd.s32 %s52, 6
      %s153 = sld [smem:[#allocation5 + %s152]]
      %s154 = smul.addr %s153, 16
      %s155 = scalar_lea.hbm %s1, %s154
      %s156 = scalar_lea.vmem [#allocation2], 6
      %s157 = scalar_lea.sflag [#allocation3], 6
      // Predicated region
      $region37: #{forward.1} parent=11 // pred_check
        _
      $region38: #{forward.1} parent=11 // pred_check_branch
        %159 = sbr.rel target = $region40
      $region39: #{forward.1} parent=11 // pred_region
        %160 = sst [smem:[#allocation8]] [#allocation21]
        %161 = sst [smem:[#allocation9]] [#allocation20]
      $region40: #{forward.1} parent=11 // pred_fallthru
        _
      %163 = shalt.err (0)
      %s165 = sshll.u32 %s156, 4
      %s166 = int_to_ptr.vmem [resolvable:$true] %s165
      %168 = dma.hbm_to_vmem [thread:$0]  %s155, 16, %s166, %s157
      %s169 = sadd.s32 %s52, 7
      %s170 = sld [smem:[#allocation5 + %s169]]
      %s171 = smul.addr %s170, 16
      %s172 = scalar_lea.hbm %s1, %s171
      %s173 = scalar_lea.vmem [#allocation2], 7
      %s174 = scalar_lea.sflag [#allocation3], 7
      // Predicated region
      $region41: #{forward.1} parent=11 // pred_check
        _
      $region42: #{forward.1} parent=11 // pred_check_branch
        %176 = sbr.rel target = $region44
      $region43: #{forward.1} parent=11 // pred_region
        %177 = sst [smem:[#allocation8]] [#allocation23]
        %178 = sst [smem:[#allocation9]] [#allocation22]
      $region44: #{forward.1} parent=11 // pred_fallthru
        _
      %180 = shalt.err (0)
      %s182 = sshll.u32 %s173, 4
      %s183 = int_to_ptr.vmem [resolvable:$true] %s182
      %185 = dma.hbm_to_vmem [thread:$0]  %s172, 16, %s183, %s174
      %187 = dma.done [#allocation3], 16
      %189 = dma.done %s72, 16
      %191 = dma.done %s89, 16
      %193 = dma.done %s106, 16
      %195 = dma.done %s123, 16
      %197 = dma.done %s140, 16
      %199 = dma.done %s157, 16
      %201 = dma.done %s174, 16
      %v202 = vld [vmem:[#allocation2] sm:$0xff]
      %vm203 = vcmask 64512
      %204 = vst.msk [vmem:[%s51] sm:$0xff] %vm203, %v202
      %p205 = scmp.lt.s32.totalorder %s12, 1
      %s206 = scalar_select %p205, %s12, 1
      %s207 = smul.addr %s206, 8
      %s208 = scalar_lea.vmem %s2, %s207
      // Predicated region
      $region45: #{forward.1} parent=11 // pred_check
        %p209 = pneg %p27
      $region46: #{forward.1} parent=11 // pred_check_branch
        %211 = sbr.rel (%p209) target = $region48
      $region47: #{forward.1} parent=11 // pred_region
        _
      $region48: #{forward.1} parent=11 // pred_fallthru
        _
    $region12: #{forward.1} parent=5 // pred_fallthru
      _
    %p212 = scmp.le.s32.totalorder 1, %s12
    // Predicated region
    $region49: #{forward.1} parent=5 // pred_check
      %p213 = pneg %p212
    $region50: #{forward.1} parent=5 // pred_check_branch
      %215 = sbr.rel (%p213) target = $region52
    $region51: #{forward.1} parent=5 // pred_region
      %s216 = ssub.s32 %s12, 1
      // Predicated region
      $region53: #{forward.1} parent=51 // pred_check
        %p217 = pneg %p33
      $region54: #{forward.1} parent=51 // pred_check_branch
        %219 = sbr.rel (%p217) target = $region56
      $region55: #{forward.1} parent=51 // pred_region
        %p220 = scmp.lt.s32.totalorder %s17, 1
        %s221 = scalar_select %p220, %s17, 1
        %s222 = smul.addr %s221, 8
        %s223 = scalar_lea.vmem %s2, %s222
      $region56: #{forward.1} parent=51 // pred_fallthru
        _
    $region52: #{forward.1} parent=5 // pred_fallthru
      _
  $region6: #{forward.1} parent=0 // loop_footer
    %s16 = sadd.s32 1, %s12
  $region7: #{forward.1} parent=0 // loop_footer_branch
    %11 = sbr.rel target = $region3
  $region8: #{forward.1} parent=0 // loop_exit
    _
  %224 = vsyncmov [#allocation3]
  %s225 = vpop.sfrf %224
  %p226 = scmp.eq.s32.totalorder %s225, 0
  %p227 = pneg %p226
  %229 = shalt.err (%p227)
  %s230 = scalar_lea.sflag [#allocation3], 1
  %231 = vsyncmov %s230
  %s232 = vpop.sfrf %231
  %p233 = scmp.eq.s32.totalorder %s232, 0
  %p234 = pneg %p233
  %236 = shalt.err (%p234)
  %s237 = scalar_lea.sflag [#allocation3], 2
  %238 = vsyncmov %s237
  %s239 = vpop.sfrf %238
  %p240 = scmp.eq.s32.totalorder %s239, 0
  %p241 = pneg %p240
  %243 = shalt.err (%p241)
  %s244 = scalar_lea.sflag [#allocation3], 3
  %245 = vsyncmov %s244
  %s246 = vpop.sfrf %245
  %p247 = scmp.eq.s32.totalorder %s246, 0
  %p248 = pneg %p247
  %250 = shalt.err (%p248)
  %s251 = scalar_lea.sflag [#allocation3], 4
  %252 = vsyncmov %s251
  %s253 = vpop.sfrf %252
  %p254 = scmp.eq.s32.totalorder %s253, 0
  %p255 = pneg %p254
  %257 = shalt.err (%p255)
  %s258 = scalar_lea.sflag [#allocation3], 5
  %259 = vsyncmov %s258
  %s260 = vpop.sfrf %259
  %p261 = scmp.eq.s32.totalorder %s260, 0
  %p262 = pneg %p261
  %264 = shalt.err (%p262)
  %s265 = scalar_lea.sflag [#allocation3], 6
  %266 = vsyncmov %s265
  %s267 = vpop.sfrf %266
  %p268 = scmp.eq.s32.totalorder %s267, 0
  %p269 = pneg %p268
  %271 = shalt.err (%p269)
  %s272 = scalar_lea.sflag [#allocation3], 7
  %273 = vsyncmov %s272
  %s274 = vpop.sfrf %273
  %p275 = scmp.eq.s32.totalorder %s274, 0
  %p276 = pneg %p275
  %278 = shalt.err (%p276)

</llo_original>
